<compile_context>
chip_gen: v5e
topology: v5e:2x2
jax: 0.10.0
libtpu: 0.0.40
codegen_flags: <defaults>
</compile_context>

<pallas_src>
import functools

import jax
import jax.numpy as jnp
from jax.experimental import pallas as pl
from jax.experimental.pallas import tpu as pltpu


def lstm_mlp_kernel(x_ref, wih_ref, whh_ref, b_ref, hc0_ref, img_ref, wmlp_ref,
                    out_ref, *, seq_len, batch, hidden_dim, visual_dim):
    """Whole LSTM recurrence + MLP head, single invocation.

    x_ref    : (S*B, L)        bf16, time-major language input (rows t*B:(t+1)*B = step t)
    wih_ref  : (L, 4H)         bf16, W_ih^T, gate order i,f,g,o along lanes
    whh_ref  : (H, 4H)         bf16, W_hh^T (fused, lane-dense: 4H == 128 for H=32)
    b_ref    : (1, 4H)         f32, b_ih + b_hh
    hc0_ref  : (2B, H)         f32, rows [0:B) = h0, rows [B:2B) = c0
    img_ref  : (B, V)          f32
    wmlp_ref : (H+V+1, out_p)  f32, rows [0:H)=W_mlp_h^T, [H:H+V)=W_mlp_v^T, [H+V]=b_mlp
    out_ref  : (B, out_p)      f32, lane-dense padded output
    """
    B, H, V = batch, hidden_dim, visual_dim

    # ---- Hoisted input projection: ONE bf16 MXU matmul covers all S steps. ----
    gx = jnp.dot(x_ref[...], wih_ref[...],
                 preferred_element_type=jnp.float32) + b_ref[...]      # (S*B, 4H) f32

    whh = whh_ref[...]                       # (H, 4H) bf16, loaded once
    h = hc0_ref[0:B, :]                      # (B, H) f32
    c = hc0_ref[B:2 * B, :]                  # (B, H) f32

    # Loop-invariant lane mask selecting the tanh ("g") gate lanes [2H, 3H).
    lane = jax.lax.broadcasted_iota(jnp.int32, (B, 4 * H), 1)
    g_mask = (lane >= 2 * H) & (lane < 3 * H)

    # Fully-unrolled recurrence; every slice index is static.
    for t in range(seq_len):
        r = t * B
        # ONE fused recurrent matmul per step (bf16 operands, f32 accumulate).
        z = gx[r:r + B, :] + jnp.dot(h.astype(jnp.bfloat16), whh,
                                     preferred_element_type=jnp.float32)  # (B, 4H)
        # All four gate nonlinearities in one tanh pass:
        #   sigmoid(x) = 0.5 * tanh(0.5 * x) + 0.5
        zz = jnp.where(g_mask, z, 0.5 * z)
        tt = jnp.tanh(zz)
        gates = jnp.where(g_mask, tt, 0.5 * tt + 0.5)
        i = gates[:, 0 * H:1 * H]
        f = gates[:, 1 * H:2 * H]
        g = gates[:, 2 * H:3 * H]
        o = gates[:, 3 * H:4 * H]
        c = f * c + i * g
        h = o * jnp.tanh(c)

    # MLP head on concat([h_T, img], axis=1): split-weight formulation with the
    # packed, lane-dense-padded weight slab (exactly equivalent to the concat).
    wmh = wmlp_ref[0:H, :]
    wmv = wmlp_ref[H:H + V, :]
    bm = wmlp_ref[H + V:H + V + 1, :]
    out_ref[...] = (jnp.dot(h, wmh, preferred_element_type=jnp.float32)
                    + jnp.dot(img_ref[...], wmv, preferred_element_type=jnp.float32)
                    + bm)


def prepare_params(params, hidden_dim, visual_dim):
    """One-time weight packing (NOT per forward call)."""
    H, V = hidden_dim, visual_dim
    out_dim = params["b_mlp"].shape[0]
    out_pad = max(128, ((out_dim + 127) // 128) * 128)   # lane-dense head width

    wih_bf = params["w_ih"].T.astype(jnp.bfloat16)                       # (L, 4H)
    whh_bf = params["w_hh"].T.astype(jnp.bfloat16)                       # (H, 4H)
    b_all = (params["b_ih"] + params["b_hh"]).reshape(1, 4 * H).astype(jnp.float32)
    hc0 = jnp.concatenate([params["h0"][0], params["c0"][0]], axis=0)    # (2B, H)

    # Packed MLP head: rows [0,H)=W_mlp_h^T, [H,H+V)=W_mlp_v^T, [H+V]=b_mlp,
    # lanes zero-padded to out_pad so the kernel's output store is unmasked.
    w_mlp_t = params["w_mlp"].T.astype(jnp.float32)                      # (H+V, out)
    packed = jnp.concatenate(
        [w_mlp_t, params["b_mlp"].reshape(1, out_dim).astype(jnp.float32)], axis=0)
    wmlp_pack = jnp.zeros((H + V + 1, out_pad), jnp.float32).at[:, :out_dim].set(packed)

    return dict(wih=wih_bf, whh=whh_bf, b=b_all, hc0=hc0, wmlp=wmlp_pack,
                out_dim=out_dim, out_pad=out_pad)


def lstm_model_forward(lang_input, img_input, prepared, hidden_dim):
    """lang_input: (B, S, L) f32, img_input: (B, V) f32 -> (B, out_dim) f32."""
    B, S, L = lang_input.shape
    V = img_input.shape[1]
    H = hidden_dim
    out_dim = prepared["out_dim"]
    out_pad = prepared["out_pad"]

    # torch.transpose(lang_input, 0, 1): batch-major -> time-major, flattened (S*B, L).
    # (Only per-call preprocessing; all weight packing is done once in prepare_params.)
    x2 = jnp.transpose(lang_input, (1, 0, 2)).reshape(S * B, L).astype(jnp.bfloat16)

    kernel = functools.partial(lstm_mlp_kernel, seq_len=S, batch=B,
                               hidden_dim=H, visual_dim=V)

    def full(shape):
        nd = len(shape)
        return pl.BlockSpec(shape, lambda i, nd=nd: (0,) * nd)

    out_full = pl.pallas_call(
        kernel,
        out_shape=jax.ShapeDtypeStruct((B, out_pad), jnp.float32),
        grid=(1,),                       # single invocation, recurrence fused in-kernel
        in_specs=[
            full((S * B, L)),            # x (time-major, flattened), bf16
            full((L, 4 * H)),            # W_ih^T, bf16
            full((H, 4 * H)),            # W_hh^T fused, bf16
            full((1, 4 * H)),            # b_ih + b_hh, f32
            full((2 * B, H)),            # [h0; c0], f32
            full((B, V)),                # img, f32
            full((H + V + 1, out_pad)),  # packed MLP head [Wh; Wv; b], f32
        ],
        out_specs=full((B, out_pad)),
        compiler_params=pltpu.CompilerParams(
            dimension_semantics=("arbitrary",),
        ),
    )(x2, prepared["wih"], prepared["whh"], prepared["b"], prepared["hc0"],
      img_input, prepared["wmlp"])

    return out_full[:, :out_dim]


def reference_forward(lang_input, img_input, params, hidden_dim,
                      mxu_dtype=jnp.float32):
    """Pure-JAX reference of the PyTorch forward.  mxu_dtype=bf16 mirrors the
    kernel's bf16-operand / f32-accumulate matmul scheme for a tight check."""
    x_tm = jnp.transpose(lang_input, (1, 0, 2))
    h = params["h0"][0]
    c = params["c0"][0]
    wih_t = params["w_ih"].T.astype(mxu_dtype)
    whh_t = params["w_hh"].T.astype(mxu_dtype)
    b = params["b_ih"] + params["b_hh"]

    def step(carry, x_t):
        h, c = carry
        gates = (jnp.dot(x_t.astype(mxu_dtype), wih_t,
                         preferred_element_type=jnp.float32)
                 + jnp.dot(h.astype(mxu_dtype), whh_t,
                           preferred_element_type=jnp.float32) + b)
        i, f, g, o = jnp.split(gates, 4, axis=1)
        c = jax.nn.sigmoid(f) * c + jax.nn.sigmoid(i) * jnp.tanh(g)
        h = jax.nn.sigmoid(o) * jnp.tanh(c)
        return (h, c), None

    (h, c), _ = jax.lax.scan(step, (h, c), x_tm)
    mlp_in = jnp.concatenate([h, img_input], axis=1)
    return mlp_in @ params["w_mlp"].T + params["b_mlp"]


if __name__ == "__main__":
    # Module config (defaults: out_dim=1, mlp_dims=[], n_layers=1, dropout=0)
    visual_dim, lang_dim, hidden_dim, out_dim = 16, 8, 32, 1
    batch, seq = 4, 8            # module hardcodes self.batch_size = 4

    key = jax.random.PRNGKey(0)
    ks = jax.random.split(key, 10)
    H, L, V = hidden_dim, lang_dim, visual_dim
    k_lstm = 1.0 / jnp.sqrt(H)

    params = {
        # nn.LSTM parameters, PyTorch gate order (i, f, g, o), uniform(-1/sqrt(H), 1/sqrt(H))
        "w_ih": jax.random.uniform(ks[0], (4 * H, L), jnp.float32, -k_lstm, k_lstm),
        "w_hh": jax.random.uniform(ks[1], (4 * H, H), jnp.float32, -k_lstm, k_lstm),
        "b_ih": jax.random.uniform(ks[2], (4 * H,), jnp.float32, -k_lstm, k_lstm),
        "b_hh": jax.random.uniform(ks[3], (4 * H,), jnp.float32, -k_lstm, k_lstm),
        # init_hidden(): torch.rand -> uniform[0,1); deterministic JAX draw here
        "h0": jax.random.uniform(ks[4], (1, batch, H), jnp.float32),
        "c0": jax.random.uniform(ks[5], (1, batch, H), jnp.float32),
        # MLP = single nn.Linear(H + V, out_dim)  (mlp_dims=[] default)
        "w_mlp": jax.random.uniform(ks[6], (out_dim, H + V), jnp.float32,
                                    -1.0 / jnp.sqrt(H + V), 1.0 / jnp.sqrt(H + V)),
        "b_mlp": jax.random.uniform(ks[7], (out_dim,), jnp.float32,
                                    -1.0 / jnp.sqrt(H + V), 1.0 / jnp.sqrt(H + V)),
    }

    lang_input = jax.random.normal(ks[8], (batch, seq, lang_dim), jnp.float32)
    img_input = jax.random.normal(ks[9], (batch, visual_dim), jnp.float32)

    prepared = prepare_params(params, hidden_dim, visual_dim)

    out = lstm_model_forward(lang_input, img_input, prepared, hidden_dim)
    out = jax.block_until_ready(out)
    assert out.shape == (batch, out_dim), out.shape

    # Tight check vs. a reference that mirrors the kernel's bf16-operand MXU math.
    ref_bf16 = reference_forward(lang_input, img_input, params, hidden_dim,
                                 mxu_dtype=jnp.bfloat16)
    assert jnp.allclose(out, ref_bf16, atol=2e-3, rtol=2e-3), (out, ref_bf16)

    # Looser check vs. the pure-f32 reference: bf16 MXU rounding compounds over
    # the S=8-step recurrence, so 1e-4 is no longer the right tolerance here.
    ref_f32 = reference_forward(lang_input, img_input, params, hidden_dim)
    assert jnp.allclose(out, ref_f32, atol=5e-2, rtol=5e-2), (out, ref_f32)

    print("KERNEL_OK")
</pallas_src>

<mosaic_0001>
module attributes {stable_mosaic.version = 11 : i64} {
  func.func @lstm_mlp_kernel(%arg0: i32, %arg1: memref<32x8xbf16, #tpu.memory_space<vmem>>, %arg2: memref<8x128xbf16, #tpu.memory_space<vmem>>, %arg3: memref<32x128xbf16, #tpu.memory_space<vmem>>, %arg4: memref<1x128xf32, #tpu.memory_space<vmem>>, %arg5: memref<8x32xf32, #tpu.memory_space<vmem>>, %arg6: memref<4x16xf32, #tpu.memory_space<vmem>>, %arg7: memref<49x128xf32, #tpu.memory_space<vmem>>, %arg8: memref<4x128xf32, #tpu.memory_space<vmem>>) attributes {dimension_semantics = [#tpu.dimension_semantics<arbitrary>], iteration_bounds = array<i64: 1>, scalar_prefetch = 0 : i64, scratch_operands = 0 : i64, tpu.core_type = #tpu.core_type<tc>, window_params = [{pipeline_mode = #tpu.pipeline_mode<synchronous>, transform_indices = @transform_0, window_bounds = array<i64: 32, 8>}, {pipeline_mode = #tpu.pipeline_mode<synchronous>, transform_indices = @transform_1, window_bounds = array<i64: 8, 128>}, {pipeline_mode = #tpu.pipeline_mode<synchronous>, transform_indices = @transform_2, window_bounds = array<i64: 32, 128>}, {pipeline_mode = #tpu.pipeline_mode<synchronous>, transform_indices = @transform_3, window_bounds = array<i64: 1, 128>}, {pipeline_mode = #tpu.pipeline_mode<synchronous>, transform_indices = @transform_4, window_bounds = array<i64: 8, 32>}, {pipeline_mode = #tpu.pipeline_mode<synchronous>, transform_indices = @transform_5, window_bounds = array<i64: 4, 16>}, {pipeline_mode = #tpu.pipeline_mode<synchronous>, transform_indices = @transform_6, window_bounds = array<i64: 49, 128>}, {pipeline_mode = #tpu.pipeline_mode<synchronous>, transform_indices = @transform_7, window_bounds = array<i64: 4, 128>}]} {
    %c0 = arith.constant 0 : index
    %c0_0 = arith.constant 0 : index
    %0 = vector.load %arg1[%c0, %c0_0] : memref<32x8xbf16, #tpu.memory_space<vmem>>, vector<32x8xbf16>
    %c0_1 = arith.constant 0 : index
    %c0_2 = arith.constant 0 : index
    %1 = vector.load %arg2[%c0_1, %c0_2] : memref<8x128xbf16, #tpu.memory_space<vmem>>, vector<8x128xbf16>
    %cst = arith.constant dense<0.000000e+00> : vector<32x128xf32>
    %2 = tpu.matmul %0, %1, %cst {dimension_numbers = #tpu.dot_dimension_numbers<[1], [0], [0], [1], [0, 0, 1, 1], [], []>} : vector<32x8xbf16>, vector<8x128xbf16>, vector<32x128xf32> -> vector<32x128xf32>
    %c0_3 = arith.constant 0 : index
    %c0_4 = arith.constant 0 : index
    %3 = vector.load %arg4[%c0_3, %c0_4] : memref<1x128xf32, #tpu.memory_space<vmem>>, vector<1x128xf32>
    %4 = vector.broadcast %3 : vector<1x128xf32> to vector<32x128xf32>
    %5 = arith.addf %2, %4 : vector<32x128xf32>
    %c0_5 = arith.constant 0 : index
    %c0_6 = arith.constant 0 : index
    %6 = vector.load %arg3[%c0_5, %c0_6] : memref<32x128xbf16, #tpu.memory_space<vmem>>, vector<32x128xbf16>
    %c0_7 = arith.constant 0 : index
    %c0_8 = arith.constant 0 : index
    %7 = vector.load %arg5[%c0_7, %c0_8] : memref<8x32xf32, #tpu.memory_space<vmem>>, vector<4x32xf32>
    %c4 = arith.constant 4 : index
    %c0_9 = arith.constant 0 : index
    %8 = vector.load %arg5[%c4, %c0_9] : memref<8x32xf32, #tpu.memory_space<vmem>>, vector<4x32xf32>
    %9 = tpu.iota {dimensions = array<i32: 1>} : vector<4x128xi32>
    %c64_i32 = arith.constant 64 : i32
    %10 = vector.broadcast %c64_i32 : i32 to vector<4x128xi32>
    %11 = arith.cmpi sge, %9, %10 : vector<4x128xi32>
    %c96_i32 = arith.constant 96 : i32
    %12 = vector.broadcast %c96_i32 : i32 to vector<4x128xi32>
    %13 = arith.cmpi slt, %9, %12 : vector<4x128xi32>
    %14 = arith.andi %11, %13 : vector<4x128xi1>
    %15 = vector.extract_strided_slice %5 {offsets = [0, 0], sizes = [4, 128], strides = [1, 1]} : vector<32x128xf32> to vector<4x128xf32>
    %16 = arith.truncf %7 : vector<4x32xf32> to vector<4x32xbf16>
    %cst_10 = arith.constant dense<0.000000e+00> : vector<4x128xf32>
    %17 = tpu.matmul %16, %6, %cst_10 {dimension_numbers = #tpu.dot_dimension_numbers<[1], [0], [0], [1], [0, 0, 1, 1], [], []>} : vector<4x32xbf16>, vector<32x128xbf16>, vector<4x128xf32> -> vector<4x128xf32>
    %18 = arith.addf %15, %17 : vector<4x128xf32>
    %cst_11 = arith.constant 5.000000e-01 : f32
    %19 = vector.broadcast %cst_11 : f32 to vector<4x128xf32>
    %20 = arith.mulf %19, %18 : vector<4x128xf32>
    %21 = arith.select %14, %18, %20 : vector<4x128xi1>, vector<4x128xf32>
    %22 = math.tanh %21 : vector<4x128xf32>
    %cst_12 = arith.constant 5.000000e-01 : f32
    %23 = vector.broadcast %cst_12 : f32 to vector<4x128xf32>
    %24 = arith.mulf %23, %22 : vector<4x128xf32>
    %cst_13 = arith.constant 5.000000e-01 : f32
    %25 = vector.broadcast %cst_13 : f32 to vector<4x128xf32>
    %26 = arith.addf %24, %25 : vector<4x128xf32>
    %27 = arith.select %14, %22, %26 : vector<4x128xi1>, vector<4x128xf32>
    %28 = vector.extract_strided_slice %27 {offsets = [0, 0], sizes = [4, 32], strides = [1, 1]} : vector<4x128xf32> to vector<4x32xf32>
    %29 = vector.extract_strided_slice %27 {offsets = [0, 32], sizes = [4, 32], strides = [1, 1]} : vector<4x128xf32> to vector<4x32xf32>
    %30 = vector.extract_strided_slice %27 {offsets = [0, 64], sizes = [4, 32], strides = [1, 1]} : vector<4x128xf32> to vector<4x32xf32>
    %31 = vector.extract_strided_slice %27 {offsets = [0, 96], sizes = [4, 32], strides = [1, 1]} : vector<4x128xf32> to vector<4x32xf32>
    %32 = arith.mulf %29, %8 : vector<4x32xf32>
    %33 = arith.mulf %28, %30 : vector<4x32xf32>
    %34 = arith.addf %32, %33 : vector<4x32xf32>
    %35 = math.tanh %34 : vector<4x32xf32>
    %36 = arith.mulf %31, %35 : vector<4x32xf32>
    %37 = vector.extract_strided_slice %5 {offsets = [4, 0], sizes = [4, 128], strides = [1, 1]} : vector<32x128xf32> to vector<4x128xf32>
    %38 = arith.truncf %36 : vector<4x32xf32> to vector<4x32xbf16>
    %cst_14 = arith.constant dense<0.000000e+00> : vector<4x128xf32>
    %39 = tpu.matmul %38, %6, %cst_14 {dimension_numbers = #tpu.dot_dimension_numbers<[1], [0], [0], [1], [0, 0, 1, 1], [], []>} : vector<4x32xbf16>, vector<32x128xbf16>, vector<4x128xf32> -> vector<4x128xf32>
    %40 = arith.addf %37, %39 : vector<4x128xf32>
    %cst_15 = arith.constant 5.000000e-01 : f32
    %41 = vector.broadcast %cst_15 : f32 to vector<4x128xf32>
    %42 = arith.mulf %41, %40 : vector<4x128xf32>
    %43 = arith.select %14, %40, %42 : vector<4x128xi1>, vector<4x128xf32>
    %44 = math.tanh %43 : vector<4x128xf32>
    %cst_16 = arith.constant 5.000000e-01 : f32
    %45 = vector.broadcast %cst_16 : f32 to vector<4x128xf32>
    %46 = arith.mulf %45, %44 : vector<4x128xf32>
    %cst_17 = arith.constant 5.000000e-01 : f32
    %47 = vector.broadcast %cst_17 : f32 to vector<4x128xf32>
    %48 = arith.addf %46, %47 : vector<4x128xf32>
    %49 = arith.select %14, %44, %48 : vector<4x128xi1>, vector<4x128xf32>
    %50 = vector.extract_strided_slice %49 {offsets = [0, 0], sizes = [4, 32], strides = [1, 1]} : vector<4x128xf32> to vector<4x32xf32>
    %51 = vector.extract_strided_slice %49 {offsets = [0, 32], sizes = [4, 32], strides = [1, 1]} : vector<4x128xf32> to vector<4x32xf32>
    %52 = vector.extract_strided_slice %49 {offsets = [0, 64], sizes = [4, 32], strides = [1, 1]} : vector<4x128xf32> to vector<4x32xf32>
    %53 = vector.extract_strided_slice %49 {offsets = [0, 96], sizes = [4, 32], strides = [1, 1]} : vector<4x128xf32> to vector<4x32xf32>
    %54 = arith.mulf %51, %34 : vector<4x32xf32>
    %55 = arith.mulf %50, %52 : vector<4x32xf32>
    %56 = arith.addf %54, %55 : vector<4x32xf32>
    %57 = math.tanh %56 : vector<4x32xf32>
    %58 = arith.mulf %53, %57 : vector<4x32xf32>
    %59 = vector.extract_strided_slice %5 {offsets = [8, 0], sizes = [4, 128], strides = [1, 1]} : vector<32x128xf32> to vector<4x128xf32>
    %60 = arith.truncf %58 : vector<4x32xf32> to vector<4x32xbf16>
    %cst_18 = arith.constant dense<0.000000e+00> : vector<4x128xf32>
    %61 = tpu.matmul %60, %6, %cst_18 {dimension_numbers = #tpu.dot_dimension_numbers<[1], [0], [0], [1], [0, 0, 1, 1], [], []>} : vector<4x32xbf16>, vector<32x128xbf16>, vector<4x128xf32> -> vector<4x128xf32>
    %62 = arith.addf %59, %61 : vector<4x128xf32>
    %cst_19 = arith.constant 5.000000e-01 : f32
    %63 = vector.broadcast %cst_19 : f32 to vector<4x128xf32>
    %64 = arith.mulf %63, %62 : vector<4x128xf32>
    %65 = arith.select %14, %62, %64 : vector<4x128xi1>, vector<4x128xf32>
    %66 = math.tanh %65 : vector<4x128xf32>
    %cst_20 = arith.constant 5.000000e-01 : f32
    %67 = vector.broadcast %cst_20 : f32 to vector<4x128xf32>
    %68 = arith.mulf %67, %66 : vector<4x128xf32>
    %cst_21 = arith.constant 5.000000e-01 : f32
    %69 = vector.broadcast %cst_21 : f32 to vector<4x128xf32>
    %70 = arith.addf %68, %69 : vector<4x128xf32>
    %71 = arith.select %14, %66, %70 : vector<4x128xi1>, vector<4x128xf32>
    %72 = vector.extract_strided_slice %71 {offsets = [0, 0], sizes = [4, 32], strides = [1, 1]} : vector<4x128xf32> to vector<4x32xf32>
    %73 = vector.extract_strided_slice %71 {offsets = [0, 32], sizes = [4, 32], strides = [1, 1]} : vector<4x128xf32> to vector<4x32xf32>
    %74 = vector.extract_strided_slice %71 {offsets = [0, 64], sizes = [4, 32], strides = [1, 1]} : vector<4x128xf32> to vector<4x32xf32>
    %75 = vector.extract_strided_slice %71 {offsets = [0, 96], sizes = [4, 32], strides = [1, 1]} : vector<4x128xf32> to vector<4x32xf32>
    %76 = arith.mulf %73, %56 : vector<4x32xf32>
    %77 = arith.mulf %72, %74 : vector<4x32xf32>
    %78 = arith.addf %76, %77 : vector<4x32xf32>
    %79 = math.tanh %78 : vector<4x32xf32>
    %80 = arith.mulf %75, %79 : vector<4x32xf32>
    %81 = vector.extract_strided_slice %5 {offsets = [12, 0], sizes = [4, 128], strides = [1, 1]} : vector<32x128xf32> to vector<4x128xf32>
    %82 = arith.truncf %80 : vector<4x32xf32> to vector<4x32xbf16>
    %cst_22 = arith.constant dense<0.000000e+00> : vector<4x128xf32>
    %83 = tpu.matmul %82, %6, %cst_22 {dimension_numbers = #tpu.dot_dimension_numbers<[1], [0], [0], [1], [0, 0, 1, 1], [], []>} : vector<4x32xbf16>, vector<32x128xbf16>, vector<4x128xf32> -> vector<4x128xf32>
    %84 = arith.addf %81, %83 : vector<4x128xf32>
    %cst_23 = arith.constant 5.000000e-01 : f32
    %85 = vector.broadcast %cst_23 : f32 to vector<4x128xf32>
    %86 = arith.mulf %85, %84 : vector<4x128xf32>
    %87 = arith.select %14, %84, %86 : vector<4x128xi1>, vector<4x128xf32>
    %88 = math.tanh %87 : vector<4x128xf32>
    %cst_24 = arith.constant 5.000000e-01 : f32
    %89 = vector.broadcast %cst_24 : f32 to vector<4x128xf32>
    %90 = arith.mulf %89, %88 : vector<4x128xf32>
    %cst_25 = arith.constant 5.000000e-01 : f32
    %91 = vector.broadcast %cst_25 : f32 to vector<4x128xf32>
    %92 = arith.addf %90, %91 : vector<4x128xf32>
    %93 = arith.select %14, %88, %92 : vector<4x128xi1>, vector<4x128xf32>
    %94 = vector.extract_strided_slice %93 {offsets = [0, 0], sizes = [4, 32], strides = [1, 1]} : vector<4x128xf32> to vector<4x32xf32>
    %95 = vector.extract_strided_slice %93 {offsets = [0, 32], sizes = [4, 32], strides = [1, 1]} : vector<4x128xf32> to vector<4x32xf32>
    %96 = vector.extract_strided_slice %93 {offsets = [0, 64], sizes = [4, 32], strides = [1, 1]} : vector<4x128xf32> to vector<4x32xf32>
    %97 = vector.extract_strided_slice %93 {offsets = [0, 96], sizes = [4, 32], strides = [1, 1]} : vector<4x128xf32> to vector<4x32xf32>
    %98 = arith.mulf %95, %78 : vector<4x32xf32>
    %99 = arith.mulf %94, %96 : vector<4x32xf32>
    %100 = arith.addf %98, %99 : vector<4x32xf32>
    %101 = math.tanh %100 : vector<4x32xf32>
    %102 = arith.mulf %97, %101 : vector<4x32xf32>
    %103 = vector.extract_strided_slice %5 {offsets = [16, 0], sizes = [4, 128], strides = [1, 1]} : vector<32x128xf32> to vector<4x128xf32>
    %104 = arith.truncf %102 : vector<4x32xf32> to vector<4x32xbf16>
    %cst_26 = arith.constant dense<0.000000e+00> : vector<4x128xf32>
    %105 = tpu.matmul %104, %6, %cst_26 {dimension_numbers = #tpu.dot_dimension_numbers<[1], [0], [0], [1], [0, 0, 1, 1], [], []>} : vector<4x32xbf16>, vector<32x128xbf16>, vector<4x128xf32> -> vector<4x128xf32>
    %106 = arith.addf %103, %105 : vector<4x128xf32>
    %cst_27 = arith.constant 5.000000e-01 : f32
    %107 = vector.broadcast %cst_27 : f32 to vector<4x128xf32>
    %108 = arith.mulf %107, %106 : vector<4x128xf32>
    %109 = arith.select %14, %106, %108 : vector<4x128xi1>, vector<4x128xf32>
    %110 = math.tanh %109 : vector<4x128xf32>
    %cst_28 = arith.constant 5.000000e-01 : f32
    %111 = vector.broadcast %cst_28 : f32 to vector<4x128xf32>
    %112 = arith.mulf %111, %110 : vector<4x128xf32>
    %cst_29 = arith.constant 5.000000e-01 : f32
    %113 = vector.broadcast %cst_29 : f32 to vector<4x128xf32>
    %114 = arith.addf %112, %113 : vector<4x128xf32>
    %115 = arith.select %14, %110, %114 : vector<4x128xi1>, vector<4x128xf32>
    %116 = vector.extract_strided_slice %115 {offsets = [0, 0], sizes = [4, 32], strides = [1, 1]} : vector<4x128xf32> to vector<4x32xf32>
    %117 = vector.extract_strided_slice %115 {offsets = [0, 32], sizes = [4, 32], strides = [1, 1]} : vector<4x128xf32> to vector<4x32xf32>
    %118 = vector.extract_strided_slice %115 {offsets = [0, 64], sizes = [4, 32], strides = [1, 1]} : vector<4x128xf32> to vector<4x32xf32>
    %119 = vector.extract_strided_slice %115 {offsets = [0, 96], sizes = [4, 32], strides = [1, 1]} : vector<4x128xf32> to vector<4x32xf32>
    %120 = arith.mulf %117, %100 : vector<4x32xf32>
    %121 = arith.mulf %116, %118 : vector<4x32xf32>
    %122 = arith.addf %120, %121 : vector<4x32xf32>
    %123 = math.tanh %122 : vector<4x32xf32>
    %124 = arith.mulf %119, %123 : vector<4x32xf32>
    %125 = vector.extract_strided_slice %5 {offsets = [20, 0], sizes = [4, 128], strides = [1, 1]} : vector<32x128xf32> to vector<4x128xf32>
    %126 = arith.truncf %124 : vector<4x32xf32> to vector<4x32xbf16>
    %cst_30 = arith.constant dense<0.000000e+00> : vector<4x128xf32>
    %127 = tpu.matmul %126, %6, %cst_30 {dimension_numbers = #tpu.dot_dimension_numbers<[1], [0], [0], [1], [0, 0, 1, 1], [], []>} : vector<4x32xbf16>, vector<32x128xbf16>, vector<4x128xf32> -> vector<4x128xf32>
    %128 = arith.addf %125, %127 : vector<4x128xf32>
    %cst_31 = arith.constant 5.000000e-01 : f32
    %129 = vector.broadcast %cst_31 : f32 to vector<4x128xf32>
    %130 = arith.mulf %129, %128 : vector<4x128xf32>
    %131 = arith.select %14, %128, %130 : vector<4x128xi1>, vector<4x128xf32>
    %132 = math.tanh %131 : vector<4x128xf32>
    %cst_32 = arith.constant 5.000000e-01 : f32
    %133 = vector.broadcast %cst_32 : f32 to vector<4x128xf32>
    %134 = arith.mulf %133, %132 : vector<4x128xf32>
    %cst_33 = arith.constant 5.000000e-01 : f32
    %135 = vector.broadcast %cst_33 : f32 to vector<4x128xf32>
    %136 = arith.addf %134, %135 : vector<4x128xf32>
    %137 = arith.select %14, %132, %136 : vector<4x128xi1>, vector<4x128xf32>
    %138 = vector.extract_strided_slice %137 {offsets = [0, 0], sizes = [4, 32], strides = [1, 1]} : vector<4x128xf32> to vector<4x32xf32>
    %139 = vector.extract_strided_slice %137 {offsets = [0, 32], sizes = [4, 32], strides = [1, 1]} : vector<4x128xf32> to vector<4x32xf32>
    %140 = vector.extract_strided_slice %137 {offsets = [0, 64], sizes = [4, 32], strides = [1, 1]} : vector<4x128xf32> to vector<4x32xf32>
    %141 = vector.extract_strided_slice %137 {offsets = [0, 96], sizes = [4, 32], strides = [1, 1]} : vector<4x128xf32> to vector<4x32xf32>
    %142 = arith.mulf %139, %122 : vector<4x32xf32>
    %143 = arith.mulf %138, %140 : vector<4x32xf32>
    %144 = arith.addf %142, %143 : vector<4x32xf32>
    %145 = math.tanh %144 : vector<4x32xf32>
    %146 = arith.mulf %141, %145 : vector<4x32xf32>
    %147 = vector.extract_strided_slice %5 {offsets = [24, 0], sizes = [4, 128], strides = [1, 1]} : vector<32x128xf32> to vector<4x128xf32>
    %148 = arith.truncf %146 : vector<4x32xf32> to vector<4x32xbf16>
    %cst_34 = arith.constant dense<0.000000e+00> : vector<4x128xf32>
    %149 = tpu.matmul %148, %6, %cst_34 {dimension_numbers = #tpu.dot_dimension_numbers<[1], [0], [0], [1], [0, 0, 1, 1], [], []>} : vector<4x32xbf16>, vector<32x128xbf16>, vector<4x128xf32> -> vector<4x128xf32>
    %150 = arith.addf %147, %149 : vector<4x128xf32>
    %cst_35 = arith.constant 5.000000e-01 : f32
    %151 = vector.broadcast %cst_35 : f32 to vector<4x128xf32>
    %152 = arith.mulf %151, %150 : vector<4x128xf32>
    %153 = arith.select %14, %150, %152 : vector<4x128xi1>, vector<4x128xf32>
    %154 = math.tanh %153 : vector<4x128xf32>
    %cst_36 = arith.constant 5.000000e-01 : f32
    %155 = vector.broadcast %cst_36 : f32 to vector<4x128xf32>
    %156 = arith.mulf %155, %154 : vector<4x128xf32>
    %cst_37 = arith.constant 5.000000e-01 : f32
    %157 = vector.broadcast %cst_37 : f32 to vector<4x128xf32>
    %158 = arith.addf %156, %157 : vector<4x128xf32>
    %159 = arith.select %14, %154, %158 : vector<4x128xi1>, vector<4x128xf32>
    %160 = vector.extract_strided_slice %159 {offsets = [0, 0], sizes = [4, 32], strides = [1, 1]} : vector<4x128xf32> to vector<4x32xf32>
    %161 = vector.extract_strided_slice %159 {offsets = [0, 32], sizes = [4, 32], strides = [1, 1]} : vector<4x128xf32> to vector<4x32xf32>
    %162 = vector.extract_strided_slice %159 {offsets = [0, 64], sizes = [4, 32], strides = [1, 1]} : vector<4x128xf32> to vector<4x32xf32>
    %163 = vector.extract_strided_slice %159 {offsets = [0, 96], sizes = [4, 32], strides = [1, 1]} : vector<4x128xf32> to vector<4x32xf32>
    %164 = arith.mulf %161, %144 : vector<4x32xf32>
    %165 = arith.mulf %160, %162 : vector<4x32xf32>
    %166 = arith.addf %164, %165 : vector<4x32xf32>
    %167 = math.tanh %166 : vector<4x32xf32>
    %168 = arith.mulf %163, %167 : vector<4x32xf32>
    %169 = vector.extract_strided_slice %5 {offsets = [28, 0], sizes = [4, 128], strides = [1, 1]} : vector<32x128xf32> to vector<4x128xf32>
    %170 = arith.truncf %168 : vector<4x32xf32> to vector<4x32xbf16>
    %cst_38 = arith.constant dense<0.000000e+00> : vector<4x128xf32>
    %171 = tpu.matmul %170, %6, %cst_38 {dimension_numbers = #tpu.dot_dimension_numbers<[1], [0], [0], [1], [0, 0, 1, 1], [], []>} : vector<4x32xbf16>, vector<32x128xbf16>, vector<4x128xf32> -> vector<4x128xf32>
    %172 = arith.addf %169, %171 : vector<4x128xf32>
    %cst_39 = arith.constant 5.000000e-01 : f32
    %173 = vector.broadcast %cst_39 : f32 to vector<4x128xf32>
    %174 = arith.mulf %173, %172 : vector<4x128xf32>
    %175 = arith.select %14, %172, %174 : vector<4x128xi1>, vector<4x128xf32>
    %176 = math.tanh %175 : vector<4x128xf32>
    %cst_40 = arith.constant 5.000000e-01 : f32
    %177 = vector.broadcast %cst_40 : f32 to vector<4x128xf32>
    %178 = arith.mulf %177, %176 : vector<4x128xf32>
    %cst_41 = arith.constant 5.000000e-01 : f32
    %179 = vector.broadcast %cst_41 : f32 to vector<4x128xf32>
    %180 = arith.addf %178, %179 : vector<4x128xf32>
    %181 = arith.select %14, %176, %180 : vector<4x128xi1>, vector<4x128xf32>
    %182 = vector.extract_strided_slice %181 {offsets = [0, 0], sizes = [4, 32], strides = [1, 1]} : vector<4x128xf32> to vector<4x32xf32>
    %183 = vector.extract_strided_slice %181 {offsets = [0, 32], sizes = [4, 32], strides = [1, 1]} : vector<4x128xf32> to vector<4x32xf32>
    %184 = vector.extract_strided_slice %181 {offsets = [0, 64], sizes = [4, 32], strides = [1, 1]} : vector<4x128xf32> to vector<4x32xf32>
    %185 = vector.extract_strided_slice %181 {offsets = [0, 96], sizes = [4, 32], strides = [1, 1]} : vector<4x128xf32> to vector<4x32xf32>
    %186 = arith.mulf %183, %166 : vector<4x32xf32>
    %187 = arith.mulf %182, %184 : vector<4x32xf32>
    %188 = arith.addf %186, %187 : vector<4x32xf32>
    %189 = math.tanh %188 : vector<4x32xf32>
    %190 = arith.mulf %185, %189 : vector<4x32xf32>
    %c0_42 = arith.constant 0 : index
    %c0_43 = arith.constant 0 : index
    %191 = vector.load %arg7[%c0_42, %c0_43] : memref<49x128xf32, #tpu.memory_space<vmem>>, vector<32x128xf32>
    %c32 = arith.constant 32 : index
    %c0_44 = arith.constant 0 : index
    %192 = vector.load %arg7[%c32, %c0_44] : memref<49x128xf32, #tpu.memory_space<vmem>>, vector<16x128xf32>
    %c48 = arith.constant 48 : index
    %c0_45 = arith.constant 0 : index
    %193 = vector.load %arg7[%c48, %c0_45] : memref<49x128xf32, #tpu.memory_space<vmem>>, vector<1x128xf32>
    %cst_46 = arith.constant dense<0.000000e+00> : vector<4x128xf32>
    %194 = tpu.matmul %190, %191, %cst_46 {dimension_numbers = #tpu.dot_dimension_numbers<[1], [0], [0], [1], [0, 0, 1, 1], [], []>} : vector<4x32xf32>, vector<32x128xf32>, vector<4x128xf32> -> vector<4x128xf32>
    %c0_47 = arith.constant 0 : index
    %c0_48 = arith.constant 0 : index
    %195 = vector.load %arg6[%c0_47, %c0_48] : memref<4x16xf32, #tpu.memory_space<vmem>>, vector<4x16xf32>
    %cst_49 = arith.constant dense<0.000000e+00> : vector<4x128xf32>
    %196 = tpu.matmul %195, %192, %cst_49 {dimension_numbers = #tpu.dot_dimension_numbers<[1], [0], [0], [1], [0, 0, 1, 1], [], []>} : vector<4x16xf32>, vector<16x128xf32>, vector<4x128xf32> -> vector<4x128xf32>
    %197 = arith.addf %194, %196 : vector<4x128xf32>
    %198 = vector.broadcast %193 : vector<1x128xf32> to vector<4x128xf32>
    %199 = arith.addf %197, %198 : vector<4x128xf32>
    %c0_50 = arith.constant 0 : index
    %c0_51 = arith.constant 0 : index
    %200 = vector.load %arg8[%c0_50, %c0_51] : memref<4x128xf32, #tpu.memory_space<vmem>>, vector<4x128xf32>
    tpu.vector_store %arg8[%c0_50, %c0_51], %199 {strides = array<i32>} : memref<4x128xf32, #tpu.memory_space<vmem>>, vector<4x128xf32>,
    return
  }
  func.func @transform_0(%arg0: i32) -> (i32, i32) {
    %c0_i32 = arith.constant 0 : i32
    %c0_i32_0 = arith.constant 0 : i32
    %c0_i32_1 = arith.constant 0 : i32
    return %c0_i32, %c0_i32_0 : i32, i32
  }
  func.func @transform_1(%arg0: i32) -> (i32, i32) {
    %c0_i32 = arith.constant 0 : i32
    %c0_i32_0 = arith.constant 0 : i32
    %c0_i32_1 = arith.constant 0 : i32
    return %c0_i32, %c0_i32_0 : i32, i32
  }
  func.func @transform_2(%arg0: i32) -> (i32, i32) {
    %c0_i32 = arith.constant 0 : i32
    %c0_i32_0 = arith.constant 0 : i32
    %c0_i32_1 = arith.constant 0 : i32
    return %c0_i32, %c0_i32_0 : i32, i32
  }
  func.func @transform_3(%arg0: i32) -> (i32, i32) {
    %c0_i32 = arith.constant 0 : i32
    %c0_i32_0 = arith.constant 0 : i32
    %c0_i32_1 = arith.constant 0 : i32
    return %c0_i32, %c0_i32_0 : i32, i32
  }
  func.func @transform_4(%arg0: i32) -> (i32, i32) {
    %c0_i32 = arith.constant 0 : i32
    %c0_i32_0 = arith.constant 0 : i32
    %c0_i32_1 = arith.constant 0 : i32
    return %c0_i32, %c0_i32_0 : i32, i32
  }
  func.func @transform_5(%arg0: i32) -> (i32, i32) {
    %c0_i32 = arith.constant 0 : i32
    %c0_i32_0 = arith.constant 0 : i32
    %c0_i32_1 = arith.constant 0 : i32
    return %c0_i32, %c0_i32_0 : i32, i32
  }
  func.func @transform_6(%arg0: i32) -> (i32, i32) {
    %c0_i32 = arith.constant 0 : i32
    %c0_i32_0 = arith.constant 0 : i32
    %c0_i32_1 = arith.constant 0 : i32
    return %c0_i32, %c0_i32_0 : i32, i32
  }
  func.func @transform_7(%arg0: i32) -> (i32, i32) {
    %c0_i32 = arith.constant 0 : i32
    %c0_i32_0 = arith.constant 0 : i32
    %c0_i32_1 = arith.constant 0 : i32
    return %c0_i32, %c0_i32_0 : i32, i32
  }
}

</mosaic_0001>

<llo_original>
// kernel: tpu_custom_call.1
$region0: #{tpu_custom_call.1}
  #allocation0 [shape = 'u32[]', space=smem, size = 0x4, offset = 0x4, fixed_abs, tag = 'smem constant byte address 0x4 - core index']
  #allocation1 [shape = 'u32[72,128]{1,0:T(1,128)}', space=vmem, size = 0x9000, scoped, tag = 'internal scratch']
  %s0 = inlined_call_operand.vmem [shape: bf16[32,8], index: 0, kind: input, shape index: {}]
  %s1 = inlined_call_operand.vmem [shape: bf16[8,128], index: 1, kind: input, shape index: {}]
  %s2 = inlined_call_operand.vmem [shape: bf16[32,128], index: 2, kind: input, shape index: {}]
  %s3 = inlined_call_operand.hbm [shape: f32[1,128], index: 3, kind: input, shape index: {}]
  %s4 = inlined_call_operand.hbm [shape: f32[8,32], index: 4, kind: input, shape index: {}]
  %s5 = inlined_call_operand.vmem [shape: f32[4,16], index: 5, kind: input, shape index: {}]
  %s6 = inlined_call_operand.hbm [shape: f32[49,128], index: 6, kind: input, shape index: {}]
  %s7 = inlined_call_operand.hbm [shape: f32[4,128], index: 7, kind: output, shape index: {}]
  %s8 = sld [smem:[#allocation0]]
  $region50: #{tpu_custom_call.1} parent=0
    _
  %s10 = ssub.s32 1, %s8
  %s11 = scalar_select 0, %s10, %s8
  $region1: #{tpu_custom_call.1} parent=0
    #allocation2 [shape = 'u8[512]{0}', space=vmem, size = 0x400, scoped, tag = 'input window, operand 3, single buffered']
    #allocation3 [shape = 's32[1]{0}', space=sflag, size = 0x4, scoped, tag = 'scoped memory for tpu_custom_call.1']
    #allocation4 [shape = 's32[1]{0}', space=sflag, size = 0x4, scoped, tag = 'scoped memory for tpu_custom_call.1']
    #allocation5 [shape = 'u8[4096]{0}', space=vmem, size = 0x1000, scoped, tag = 'input window, operand 4, single buffered']
    #allocation6 [shape = 's32[1]{0}', space=sflag, size = 0x4, scoped, tag = 'scoped memory for tpu_custom_call.1']
    #allocation7 [shape = 'u8[28672]{0}', space=vmem, size = 0x7000, scoped, tag = 'input window, operand 6, single buffered']
    #allocation8 [shape = 'u8[2048]{0}', space=vmem, size = 0x800, scoped, tag = 'output window, operand 0, single buffered']
    %12 = vsyncpa [#allocation3], 0
    %13 = vsyncpa [#allocation6], 0
    %14 = vsyncpa [#allocation4], 0
    // Predicated region
    $region2: #{tpu_custom_call.1} parent=1 // pred_check
      _
    $region3: #{tpu_custom_call.1} parent=1 // pred_check_branch
      %16 = sbr.rel (0) target = $region5
    $region4: #{tpu_custom_call.1} parent=1 // pred_region
      _
    $region5: #{tpu_custom_call.1} parent=1 // pred_fallthru
      _
    // Predicated region
    $region6: #{tpu_custom_call.1} parent=1 // pred_check
      _
    $region7: #{tpu_custom_call.1} parent=1 // pred_check_branch
      %18 = sbr.rel (0) target = $region9
    $region8: #{tpu_custom_call.1} parent=1 // pred_region
      _
    $region9: #{tpu_custom_call.1} parent=1 // pred_fallthru
      _
    // Predicated region
    $region10: #{tpu_custom_call.1} parent=1 // pred_check
      _
    $region11: #{tpu_custom_call.1} parent=1 // pred_check_branch
      %20 = sbr.rel (0) target = $region13
    $region12: #{tpu_custom_call.1} parent=1 // pred_region
      _
    $region13: #{tpu_custom_call.1} parent=1 // pred_fallthru
      _
    // Predicated region
    $region14: #{tpu_custom_call.1} parent=1 // pred_check
      _
    $region15: #{tpu_custom_call.1} parent=1 // pred_check_branch
      %22 = sbr.rel (0) target = $region17
    $region16: #{tpu_custom_call.1} parent=1 // pred_region
      %24 = vsyncadd [#allocation3], 0
      %s26 = sshll.u32 %s3, 4
      %s27 = int_to_ptr.hbm [resolvable:$true] %s26
      %s28 = sshll.u32 [#allocation2], 4
      %s29 = int_to_ptr.vmem [resolvable:$true] %s28
      %31 = dma.hbm_to_vmem [thread:$0]  %s27, 16, %s29, [#allocation3]
    $region17: #{tpu_custom_call.1} parent=1 // pred_fallthru
      _
    // Predicated region
    $region18: #{tpu_custom_call.1} parent=1 // pred_check
      _
    $region19: #{tpu_custom_call.1} parent=1 // pred_check_branch
      %33 = sbr.rel (0) target = $region21
    $region20: #{tpu_custom_call.1} parent=1 // pred_region
      %35 = vsyncadd [#allocation6], 0
      %s37 = sshll.u32 %s4, 4
      %s38 = int_to_ptr.hbm [resolvable:$true] %s37
      %s39 = sshll.u32 [#allocation5], 4
      %s40 = int_to_ptr.vmem [resolvable:$true] %s39
      %42 = dma.hbm_to_vmem [thread:$0]  %s38, 128, %s40, [#allocation6]
    $region21: #{tpu_custom_call.1} parent=1 // pred_fallthru
      _
    // Predicated region
    $region22: #{tpu_custom_call.1} parent=1 // pred_check
      _
    $region23: #{tpu_custom_call.1} parent=1 // pred_check_branch
      %44 = sbr.rel (0) target = $region25
    $region24: #{tpu_custom_call.1} parent=1 // pred_region
      _
    $region25: #{tpu_custom_call.1} parent=1 // pred_fallthru
      _
    // Predicated region
    $region26: #{tpu_custom_call.1} parent=1 // pred_check
      _
    $region27: #{tpu_custom_call.1} parent=1 // pred_check_branch
      %46 = sbr.rel (0) target = $region29
    $region28: #{tpu_custom_call.1} parent=1 // pred_region
      %48 = vsyncadd [#allocation6], 0
      %s49 = sshll.u32 %s6, 4
      %s50 = int_to_ptr.hbm [resolvable:$true] %s49
      %s51 = sshll.u32 [#allocation7], 4
      %s52 = int_to_ptr.vmem [resolvable:$true] %s51
      %57 = dma.hbm_to_vmem [thread:$0]  %s50, 896, %s52, [#allocation6], 128, 128, 8
    $region29: #{tpu_custom_call.1} parent=1 // pred_fallthru
      _
    // Predicated region
    $region30: #{tpu_custom_call.1} parent=1 // pred_check
      _
    $region31: #{tpu_custom_call.1} parent=1 // pred_check_branch
      %59 = sbr.rel (0) target = $region33
    $region32: #{tpu_custom_call.1} parent=1 // pred_region
      %61 = dma.done [#allocation3], 16
    $region33: #{tpu_custom_call.1} parent=1 // pred_fallthru
      _
    // Predicated region
    $region34: #{tpu_custom_call.1} parent=1 // pred_check
      _
    $region35: #{tpu_custom_call.1} parent=1 // pred_check_branch
      %63 = sbr.rel (0) target = $region37
    $region36: #{tpu_custom_call.1} parent=1 // pred_region
      %65 = dma.done [#allocation6], 128
    $region37: #{tpu_custom_call.1} parent=1 // pred_fallthru
      _
    // Predicated region
    $region38: #{tpu_custom_call.1} parent=1 // pred_check
      _
    $region39: #{tpu_custom_call.1} parent=1 // pred_check_branch
      %67 = sbr.rel (0) target = $region41
    $region40: #{tpu_custom_call.1} parent=1 // pred_region
      %69 = dma.done [#allocation6], 896
    $region41: #{tpu_custom_call.1} parent=1 // pred_fallthru
      _
    %v71 = vld [vmem:[%s0] sm:$0xf]
    %v72 = vld [vmem:[%s0 + $0x4] sm:$0xf]
    %v73 = vld [vmem:[%s0 + $0x8] sm:$0xf]
    %v74 = vld [vmem:[%s0 + $0xc] sm:$0xf]
    %v75 = vld [vmem:[%s1] sm:$0xf]
    %v76 = vld [vmem:[#allocation2] sm:$0x1]
    %v78 = vperm.slane %v76, 0
    %v84 = vunpack.c.l.b16 %v71
    %v85 = vunpack.c.l.b16 %v72
    %v86 = vunpack.c.l.b16 %v73
    %v87 = vunpack.c.l.b16 %v74
    %v88 = vpack.c.b16 %v85, %v84
    %v89 = vpack.c.b16 %v87, %v86
    %vm90 = vcmask 64512
    %v92 = vsel %vm90, %v88, 0
    %v95 = vsel %vm90, %v89, 0
    %vm97 = vcmask 1043456
    %v99 = vsel %vm97, %v75, 0
    %101 = vmatpush.bf16.msra.mxu0 0
    %102 = vmatpush.bf16.msra.mxu0 0
    %103 = vmatpush.bf16.msra.mxu0 0
    %104 = vmatpush.bf16.msra.mxu0 0
    %105 = vmatpush.bf16.msra.mxu0 0
    %106 = vmatpush.bf16.msra.mxu0 0
    %107 = vmatpush.bf16.msra.mxu0 0
    %108 = vmatpush.bf16.msra.mxu0 %v99
    %109 = vmatmul.bf16.gmra.mxu0 %v92
    %v110 = vpop.f32.mrf.mxu0
    %v111 = vadd.f32 %v78, %v110
    %v112 = vpop.f32.mrf.mxu0
    %v113 = vadd.f32 %v78, %v112
    %114 = vmatmul.bf16.gmra.mxu0 %v95
    %v115 = vpop.f32.mrf.mxu0
    %v116 = vadd.f32 %v78, %v115
    %v117 = vpop.f32.mrf.mxu0
    %v118 = vadd.f32 %v78, %v117
    %119 = vdwg.mxu0
    %v120 = vld [vmem:[%s2] sm:$0xf]
    %v121 = vld [vmem:[%s2 + $0x4] sm:$0xf]
    %v122 = vld [vmem:[%s2 + $0x8] sm:$0xf]
    %v123 = vld [vmem:[%s2 + $0xc] sm:$0xf]
    %v124 = vld [vmem:[#allocation5] sm:$0xf]
    %v125 = vld [vmem:[#allocation5 + $0x4] sm:$0xf]
    %v126 = vlaneseq
    %v127 = vand.u32 %v126, 127
    %vm128 = vcmp.ge.s32.totalorder %v127, 64
    %vm129 = vcmp.lt.s32.totalorder %v127, 96
    %vm130 = vmand %vm128, %vm129
    %v131 = vpack.c.bf16 %v124, %v124
    %v136 = vunpack.c.l.b16 %v120
    %v137 = vunpack.c.l.b16 %v121
    %v138 = vunpack.c.l.b16 %v122
    %v139 = vunpack.c.l.b16 %v123
    %v140 = vpack.c.b16 %v137, %v136
    %v141 = vpack.c.b16 %v139, %v138
    %vm144 = vcmask 261120
    %v146 = vsel %vm144, %v131, 0
    %148 = vmatpush.bf16.msra.mxu0 0
    %149 = vmatpush.bf16.msra.mxu0 0
    %150 = vmatpush.bf16.msra.mxu0 0
    %151 = vmatpush.bf16.msra.mxu0 0
    %152 = vmatpush.bf16.msra.mxu0 0
    %153 = vmatpush.bf16.msra.mxu0 0
    %154 = vmatpush.bf16.msra.mxu0 %v141
    %155 = vmatpush.bf16.msra.mxu0 %v140
    %156 = vmatmul.bf16.gmra.mxu0 %v146
    %v157 = vpop.f32.mrf.mxu0
    %v158 = vadd.f32 0.0, %v157
    %v159 = vpop.f32.mrf.mxu0
    %160 = vdwg.mxu0
    %v161 = vadd.f32 %v111, %v158
    %v162 = vmul.f32 %v161, 0.5
    %v163 = vsel %vm130, %v161, %v162
    %v164 = vtanh.pop %v163
    %v165 = vmul.f32 %v164, 0.5
    %v166 = vadd.f32 %v165, 0.5
    %v167 = vsel %vm130, %v164, %v166
    %169 = vrot.lane.b32.xlu0 %v125, 32
    %v170 = vpop.permute.xlu0 %169
    %v172 = vmul.f32 %v167, %v170
    %174 = vrot.lane.b32.xlu0 %v167, 64
    %v175 = vpop.permute.xlu0 %174
    %v177 = vmul.f32 %v167, %v175
    %179 = vrot.lane.b32.xlu0 %v177, 32
    %v180 = vpop.permute.xlu0 %179
    %v182 = vadd.f32 %v172, %v180
    %v183 = vtanh.pop %v182
    %185 = vrot.lane.b32.xlu0 %v183, 64
    %v186 = vpop.permute.xlu0 %185
    %v188 = vmul.f32 %v167, %v186
    %v189 = vpack.c.bf16 %v188, %v188
    %191 = vrot.lane.b32.xlu0 %v189, 32
    %v192 = vpop.permute.xlu0 %191
    %v194 = vsel %vm144, %v192, 0
    %196 = vmatpush.bf16.msra.mxu0 0
    %197 = vmatpush.bf16.msra.mxu0 0
    %198 = vmatpush.bf16.msra.mxu0 0
    %199 = vmatpush.bf16.msra.mxu0 0
    %200 = vmatpush.bf16.msra.mxu0 0
    %201 = vmatpush.bf16.msra.mxu0 0
    %202 = vmatpush.bf16.msra.mxu0 %v141
    %203 = vmatpush.bf16.msra.mxu0 %v140
    %204 = vmatmul.bf16.gmra.mxu0 %v194
    %v205 = vpop.f32.mrf.mxu0
    %v206 = vadd.f32 0.0, %v205
    %v207 = vpop.f32.mrf.mxu0
    %208 = vdwg.mxu0
    %v210 = vrot.slane %v206, 4
    %v212 = vadd.f32 %v111, %v210
    %v213 = vmul.f32 %v212, 0.5
    %v214 = vsel %vm130, %v212, %v213
    %v215 = vtanh.pop %v214
    %v216 = vmul.f32 %v215, 0.5
    %v217 = vadd.f32 %v216, 0.5
    %v218 = vsel %vm130, %v215, %v217
    %v220 = vrot.slane %v182, 4
    %v222 = vmul.f32 %v218, %v220
    %224 = vrot.lane.b32.xlu0 %v218, 64
    %v225 = vpop.permute.xlu0 %224
    %v227 = vmul.f32 %v218, %v225
    %229 = vrot.lane.b32.xlu0 %v227, 32
    %v230 = vpop.permute.xlu0 %229
    %v232 = vadd.f32 %v222, %v230
    %v233 = vtanh.pop %v232
    %235 = vrot.lane.b32.xlu0 %v233, 64
    %v236 = vpop.permute.xlu0 %235
    %v238 = vmul.f32 %v218, %v236
    %v239 = vpack.c.bf16 %v238, %v238
    %v241 = vrot.slane %v239, 2
    %242 = vrot.lane.b32.xlu0 %v241, 32
    %v243 = vpop.permute.xlu0 %242
    %v245 = vsel %vm144, %v243, 0
    %247 = vmatpush.bf16.msra.mxu0 0
    %248 = vmatpush.bf16.msra.mxu0 0
    %249 = vmatpush.bf16.msra.mxu0 0
    %250 = vmatpush.bf16.msra.mxu0 0
    %251 = vmatpush.bf16.msra.mxu0 0
    %252 = vmatpush.bf16.msra.mxu0 0
    %253 = vmatpush.bf16.msra.mxu0 %v141
    %254 = vmatpush.bf16.msra.mxu0 %v140
    %255 = vmatmul.bf16.gmra.mxu0 %v245
    %v256 = vpop.f32.mrf.mxu0
    %v257 = vadd.f32 0.0, %v256
    %v258 = vpop.f32.mrf.mxu0
    %259 = vdwg.mxu0
    %v260 = vadd.f32 %v113, %v257
    %v261 = vmul.f32 %v260, 0.5
    %v262 = vsel %vm130, %v260, %v261
    %v263 = vtanh.pop %v262
    %v264 = vmul.f32 %v263, 0.5
    %v265 = vadd.f32 %v264, 0.5
    %v266 = vsel %vm130, %v263, %v265
    %v268 = vrot.slane %v232, 4
    %v270 = vmul.f32 %v266, %v268
    %272 = vrot.lane.b32.xlu0 %v266, 64
    %v273 = vpop.permute.xlu0 %272
    %v275 = vmul.f32 %v266, %v273
    %277 = vrot.lane.b32.xlu0 %v275, 32
    %v278 = vpop.permute.xlu0 %277
    %v280 = vadd.f32 %v270, %v278
    %v281 = vtanh.pop %v280
    %283 = vrot.lane.b32.xlu0 %v281, 64
    %v284 = vpop.permute.xlu0 %283
    %v286 = vmul.f32 %v266, %v284
    %v287 = vpack.c.bf16 %v286, %v286
    %289 = vrot.lane.b32.xlu0 %v287, 32
    %v290 = vpop.permute.xlu0 %289
    %v292 = vsel %vm144, %v290, 0
    %294 = vmatpush.bf16.msra.mxu0 0
    %295 = vmatpush.bf16.msra.mxu0 0
    %296 = vmatpush.bf16.msra.mxu0 0
    %297 = vmatpush.bf16.msra.mxu0 0
    %298 = vmatpush.bf16.msra.mxu0 0
    %299 = vmatpush.bf16.msra.mxu0 0
    %300 = vmatpush.bf16.msra.mxu0 %v141
    %301 = vmatpush.bf16.msra.mxu0 %v140
    %302 = vmatmul.bf16.gmra.mxu0 %v292
    %v303 = vpop.f32.mrf.mxu0
    %v304 = vadd.f32 0.0, %v303
    %v305 = vpop.f32.mrf.mxu0
    %306 = vdwg.mxu0
    %v308 = vrot.slane %v304, 4
    %v310 = vadd.f32 %v113, %v308
    %v311 = vmul.f32 %v310, 0.5
    %v312 = vsel %vm130, %v310, %v311
    %v313 = vtanh.pop %v312
    %v314 = vmul.f32 %v313, 0.5
    %v315 = vadd.f32 %v314, 0.5
    %v316 = vsel %vm130, %v313, %v315
    %v318 = vrot.slane %v280, 4
    %v320 = vmul.f32 %v316, %v318
    %322 = vrot.lane.b32.xlu0 %v316, 64
    %v323 = vpop.permute.xlu0 %322
    %v325 = vmul.f32 %v316, %v323
    %327 = vrot.lane.b32.xlu0 %v325, 32
    %v328 = vpop.permute.xlu0 %327
    %v330 = vadd.f32 %v320, %v328
    %v331 = vtanh.pop %v330
    %333 = vrot.lane.b32.xlu0 %v331, 64
    %v334 = vpop.permute.xlu0 %333
    %v336 = vmul.f32 %v316, %v334
    %v337 = vpack.c.bf16 %v336, %v336
    %v339 = vrot.slane %v337, 2
    %340 = vrot.lane.b32.xlu0 %v339, 32
    %v341 = vpop.permute.xlu0 %340
    %v343 = vsel %vm144, %v341, 0
    %345 = vmatpush.bf16.msra.mxu0 0
    %346 = vmatpush.bf16.msra.mxu0 0
    %347 = vmatpush.bf16.msra.mxu0 0
    %348 = vmatpush.bf16.msra.mxu0 0
    %349 = vmatpush.bf16.msra.mxu0 0
    %350 = vmatpush.bf16.msra.mxu0 0
    %351 = vmatpush.bf16.msra.mxu0 %v141
    %352 = vmatpush.bf16.msra.mxu0 %v140
    %353 = vmatmul.bf16.gmra.mxu0 %v343
    %v354 = vpop.f32.mrf.mxu0
    %v355 = vadd.f32 0.0, %v354
    %v356 = vpop.f32.mrf.mxu0
    %357 = vdwg.mxu0
    %v358 = vadd.f32 %v116, %v355
    %v359 = vmul.f32 %v358, 0.5
    %v360 = vsel %vm130, %v358, %v359
    %v361 = vtanh.pop %v360
    %v362 = vmul.f32 %v361, 0.5
    %v363 = vadd.f32 %v362, 0.5
    %v364 = vsel %vm130, %v361, %v363
    %v366 = vrot.slane %v330, 4
    %v368 = vmul.f32 %v364, %v366
    %370 = vrot.lane.b32.xlu0 %v364, 64
    %v371 = vpop.permute.xlu0 %370
    %v373 = vmul.f32 %v364, %v371
    %375 = vrot.lane.b32.xlu0 %v373, 32
    %v376 = vpop.permute.xlu0 %375
    %v378 = vadd.f32 %v368, %v376
    %v379 = vtanh.pop %v378
    %381 = vrot.lane.b32.xlu0 %v379, 64
    %v382 = vpop.permute.xlu0 %381
    %v384 = vmul.f32 %v364, %v382
    %v385 = vpack.c.bf16 %v384, %v384
    %387 = vrot.lane.b32.xlu0 %v385, 32
    %v388 = vpop.permute.xlu0 %387
    %v390 = vsel %vm144, %v388, 0
    %392 = vmatpush.bf16.msra.mxu0 0
    %393 = vmatpush.bf16.msra.mxu0 0
    %394 = vmatpush.bf16.msra.mxu0 0
    %395 = vmatpush.bf16.msra.mxu0 0
    %396 = vmatpush.bf16.msra.mxu0 0
    %397 = vmatpush.bf16.msra.mxu0 0
    %398 = vmatpush.bf16.msra.mxu0 %v141
    %399 = vmatpush.bf16.msra.mxu0 %v140
    %400 = vmatmul.bf16.gmra.mxu0 %v390
    %v401 = vpop.f32.mrf.mxu0
    %v402 = vadd.f32 0.0, %v401
    %v403 = vpop.f32.mrf.mxu0
    %404 = vdwg.mxu0
    %v406 = vrot.slane %v402, 4
    %v408 = vadd.f32 %v116, %v406
    %v409 = vmul.f32 %v408, 0.5
    %v410 = vsel %vm130, %v408, %v409
    %v411 = vtanh.pop %v410
    %v412 = vmul.f32 %v411, 0.5
    %v413 = vadd.f32 %v412, 0.5
    %v414 = vsel %vm130, %v411, %v413
    %v416 = vrot.slane %v378, 4
    %v418 = vmul.f32 %v414, %v416
    %420 = vrot.lane.b32.xlu0 %v414, 64
    %v421 = vpop.permute.xlu0 %420
    %v423 = vmul.f32 %v414, %v421
    %425 = vrot.lane.b32.xlu0 %v423, 32
    %v426 = vpop.permute.xlu0 %425
    %v428 = vadd.f32 %v418, %v426
    %v429 = vtanh.pop %v428
    %431 = vrot.lane.b32.xlu0 %v429, 64
    %v432 = vpop.permute.xlu0 %431
    %v434 = vmul.f32 %v414, %v432
    %v435 = vpack.c.bf16 %v434, %v434
    %v437 = vrot.slane %v435, 2
    %438 = vrot.lane.b32.xlu0 %v437, 32
    %v439 = vpop.permute.xlu0 %438
    %v441 = vsel %vm144, %v439, 0
    %443 = vmatpush.bf16.msra.mxu0 0
    %444 = vmatpush.bf16.msra.mxu0 0
    %445 = vmatpush.bf16.msra.mxu0 0
    %446 = vmatpush.bf16.msra.mxu0 0
    %447 = vmatpush.bf16.msra.mxu0 0
    %448 = vmatpush.bf16.msra.mxu0 0
    %449 = vmatpush.bf16.msra.mxu0 %v141
    %450 = vmatpush.bf16.msra.mxu0 %v140
    %451 = vmatmul.bf16.gmra.mxu0 %v441
    %v452 = vpop.f32.mrf.mxu0
    %v453 = vadd.f32 0.0, %v452
    %v454 = vpop.f32.mrf.mxu0
    %455 = vdwg.mxu0
    %v456 = vadd.f32 %v118, %v453
    %v457 = vmul.f32 %v456, 0.5
    %v458 = vsel %vm130, %v456, %v457
    %v459 = vtanh.pop %v458
    %v460 = vmul.f32 %v459, 0.5
    %v461 = vadd.f32 %v460, 0.5
    %v462 = vsel %vm130, %v459, %v461
    %v464 = vrot.slane %v428, 4
    %v466 = vmul.f32 %v462, %v464
    %468 = vrot.lane.b32.xlu0 %v462, 64
    %v469 = vpop.permute.xlu0 %468
    %v471 = vmul.f32 %v462, %v469
    %473 = vrot.lane.b32.xlu0 %v471, 32
    %v474 = vpop.permute.xlu0 %473
    %v476 = vadd.f32 %v466, %v474
    %v477 = vtanh.pop %v476
    %479 = vrot.lane.b32.xlu0 %v477, 64
    %v480 = vpop.permute.xlu0 %479
    %v482 = vmul.f32 %v462, %v480
    %v483 = vpack.c.bf16 %v482, %v482
    %485 = vrot.lane.b32.xlu0 %v483, 32
    %v486 = vpop.permute.xlu0 %485
    %v488 = vsel %vm144, %v486, 0
    %490 = vmatpush.bf16.msra.mxu0 0
    %491 = vmatpush.bf16.msra.mxu0 0
    %492 = vmatpush.bf16.msra.mxu0 0
    %493 = vmatpush.bf16.msra.mxu0 0
    %494 = vmatpush.bf16.msra.mxu0 0
    %495 = vmatpush.bf16.msra.mxu0 0
    %496 = vmatpush.bf16.msra.mxu0 %v141
    %497 = vmatpush.bf16.msra.mxu0 %v140
    %498 = vmatmul.bf16.gmra.mxu0 %v488
    %v499 = vpop.f32.mrf.mxu0
    %v500 = vadd.f32 0.0, %v499
    %v501 = vpop.f32.mrf.mxu0
    %502 = vdwg.mxu0
    %v504 = vrot.slane %v500, 4
    %v506 = vadd.f32 %v118, %v504
    %v507 = vmul.f32 %v506, 0.5
    %v508 = vsel %vm130, %v506, %v507
    %v509 = vtanh.pop %v508
    %v510 = vmul.f32 %v509, 0.5
    %v511 = vadd.f32 %v510, 0.5
    %v512 = vsel %vm130, %v509, %v511
    %v514 = vrot.slane %v476, 4
    %v516 = vmul.f32 %v512, %v514
    %518 = vrot.lane.b32.xlu0 %v512, 64
    %v519 = vpop.permute.xlu0 %518
    %v521 = vmul.f32 %v512, %v519
    %523 = vrot.lane.b32.xlu0 %v521, 32
    %v524 = vpop.permute.xlu0 %523
    %v526 = vadd.f32 %v516, %v524
    %v527 = vtanh.pop %v526
    %529 = vrot.lane.b32.xlu0 %v527, 64
    %v530 = vpop.permute.xlu0 %529
    %v532 = vmul.f32 %v512, %v530
    %v533 = vld [vmem:[#allocation7] sm:$0xff]
    %v534 = vld [vmem:[#allocation7 + $0x8] sm:$0xff]
    %v535 = vld [vmem:[#allocation7 + $0x10] sm:$0xff]
    %v536 = vld [vmem:[#allocation7 + $0x18] sm:$0xff]
    %v537 = vld [vmem:[#allocation7 + $0x20] sm:$0xff]
    %v538 = vld [vmem:[#allocation7 + $0x28] sm:$0xff]
    %v539 = vld [vmem:[#allocation7 + $0x30] sm:$0x1]
    %v540 = vld [vmem:[%s5] sm:$0xf]
    %vm541 = vcmask 130048
    %v543 = vsel %vm541, %v540, 0
    %545 = vmatpush.msra.mxu0 0.0
    %546 = vmatpush.msra.mxu0 0.0
    %547 = vmatpush.msra.mxu0 0.0
    %548 = vmatpush.msra.mxu0 0.0
    %549 = vmatpush.msra.mxu0 0.0
    %550 = vmatpush.msra.mxu0 0.0
    %551 = vmatpush.msra.mxu0 0.0
    %552 = vmatpush.msra.mxu0 0.0
    %553 = vmatpush.msra.mxu0 0.0
    %554 = vmatpush.msra.mxu0 0.0
    %555 = vmatpush.msra.mxu0 0.0
    %556 = vmatpush.msra.mxu0 0.0
    %557 = vmatpush.msra.mxu0 0.0
    %558 = vmatpush.msra.mxu0 0.0
    %559 = vmatpush.msra.mxu0 %v538
    %560 = vmatpush.msra.mxu0 %v537
    %561 = vmatmul.f32.gmra.mxu0 %v543
    %v562 = vpop.f32.mrf.mxu0
    %v563 = vadd.f32 0.0, %v562
    %564 = vdwg.mxu0
    %v566 = vrot.slane %v532, 4
    %567 = vrot.lane.b32.xlu0 %v566, 32
    %v568 = vpop.permute.xlu0 %567
    %v569 = vsel %vm144, %v568, 0
    %571 = vmatpush.msra.mxu0 0.0
    %572 = vmatpush.msra.mxu0 0.0
    %573 = vmatpush.msra.mxu0 0.0
    %574 = vmatpush.msra.mxu0 0.0
    %575 = vmatpush.msra.mxu0 0.0
    %576 = vmatpush.msra.mxu0 0.0
    %577 = vmatpush.msra.mxu0 0.0
    %578 = vmatpush.msra.mxu0 0.0
    %579 = vmatpush.msra.mxu0 0.0
    %580 = vmatpush.msra.mxu0 0.0
    %581 = vmatpush.msra.mxu0 0.0
    %582 = vmatpush.msra.mxu0 0.0
    %583 = vmatpush.msra.mxu0 %v536
    %584 = vmatpush.msra.mxu0 %v535
    %585 = vmatpush.msra.mxu0 %v534
    %586 = vmatpush.msra.mxu0 %v533
    %587 = vmatmul.f32.gmra.mxu0 %v569
    %v588 = vpop.f32.mrf.mxu0
    %v589 = vadd.f32 %v563, %v588
    %590 = vdwg.mxu0
    %v591 = vperm.slane %v539, 0
    %v592 = vadd.f32 %v589, %v591
    %593 = vst [vmem:[#allocation8] sm:$0xf] %v592
    // Predicated region
    $region42: #{tpu_custom_call.1} parent=1 // pred_check
      _
    $region43: #{tpu_custom_call.1} parent=1 // pred_check_branch
      %595 = sbr.rel (0) target = $region45
    $region44: #{tpu_custom_call.1} parent=1 // pred_region
      %597 = vsyncadd [#allocation4], 0
      %s599 = sshll.u32 [#allocation8], 4
      %s600 = int_to_ptr.vmem [resolvable:$true] %s599
      %s601 = sshll.u32 %s7, 4
      %s602 = int_to_ptr.hbm [resolvable:$true] %s601
      %604 = dma.vmem_to_hbm [thread:$0]  %s600, 64, %s602, [#allocation4]
    $region45: #{tpu_custom_call.1} parent=1 // pred_fallthru
      _
    // Predicated region
    $region46: #{tpu_custom_call.1} parent=1 // pred_check
      _
    $region47: #{tpu_custom_call.1} parent=1 // pred_check_branch
      %606 = sbr.rel (0) target = $region49
    $region48: #{tpu_custom_call.1} parent=1 // pred_region
      %608 = dma.done [#allocation4], 64
    $region49: #{tpu_custom_call.1} parent=1 // pred_fallthru
      _
    %609 = vsyncpa [#allocation3], 1
    %610 = vsyncpa [#allocation6], 1
    %611 = vsyncpa [#allocation4], 1

</llo_original>
